<compile_context>
chip_gen: v6e
topology: v6e:2x2x1
jax: 0.10.0
libtpu: 0.0.40
codegen_flags: <defaults>
</compile_context>

<pallas_src>
import jax
import jax.numpy as jnp
from jax import lax
from jax.experimental import pallas as pl
from jax.experimental.pallas import tpu as pltpu


def _vtile(x, n):
    """Replicate x n times along axis 0 via concatenate (Mosaic-safe, no reshape)."""
    return jnp.concatenate([x] * n, axis=0)


def _loss_math(eb, lab_r, u_flat, *, margin, cutoff, nonzero_loss_cutoff):
    """Shared forward math (jnp/lax only) used by both the kernel body and the ref.

    eb     : (B, D)    bf16 embeddings
    lab_r  : (1, B)    f32 labels (small integers, exactly representable)
    u_flat : (B*B, 1)  f32 uniforms in [0, 1); row r = p*B + a drives the negative
                       draw paired with positive-column slot p of anchor a.
    """
    f32 = jnp.float32
    bf16 = jnp.bfloat16
    B, D = eb.shape
    BB = B * B

    # --- pairwise_distances(embeddings, squared=False) ------------------------------
    # bf16 operands straight into the MXU, f32 accumulation; NT dot_general -> no
    # transpose emitted.  Squared norms come from the Gram diagonal (exact single-term
    # masked sums), matching the PyTorch formulation and removing two skinny inputs.
    dot = lax.dot_general(eb, eb, (((1,), (1,)), ((), ())), preferred_element_type=f32)
    row = lax.broadcasted_iota(jnp.int32, (B, B), 0)
    col = lax.broadcasted_iota(jnp.int32, (B, B), 1)
    diag = (row == col).astype(f32)
    sq_c = jnp.sum(dot * diag, axis=1, keepdims=True)     # (B, 1)
    sq_r = jnp.sum(dot * diag, axis=0, keepdims=True)     # (1, B)
    d2 = jnp.maximum(sq_c + sq_r - 2.0 * dot, 0.0)
    # cutoff > 0, so the zero-distance epsilon branch of the reference is dead here.
    dist = jnp.maximum(jnp.sqrt(d2), cutoff)               # distance.clamp(min=cutoff)

    # --- label masks (column orientation derived exactly, no transpose) --------------
    lab_c = jnp.sum(diag * lab_r, axis=1, keepdims=True)   # (B, 1) exact copy
    labels_eq = lab_c == lab_r
    pos_f = jnp.logical_and(labels_eq, row != col).astype(f32)   # anchor-positive
    neg_f = jnp.logical_not(labels_eq).astype(f32)               # anchor-negative

    # --- distance-weighted sampling weights (Wu et al.) ------------------------------
    dd = float(D)
    lw = (2.0 - dd) * jnp.log(dist) - 0.5 * (dd - 3.0) * jnp.log(
        jnp.maximum(1.0 - 0.25 * dist * dist, 1e-8))
    lw_min = jnp.min(lw)
    lw_max = jnp.max(lw)
    inv_den = 1.0 / (lw_max - lw_min + 1e-8)                # hoisted scalar reciprocal
    # PyTorch's (lw-min)/(max-min+eps) followed by subtracting its max folds to this.
    w = jnp.exp((lw - lw_max) * inv_den)
    w = w * neg_f * (dist < nonzero_loss_cutoff).astype(f32)
    ws = jnp.sum(w, axis=1, keepdims=True)                  # (B, 1)

    # fallback: rows whose weights sum to zero sample uniformly over negatives
    r = jnp.where(ws > 0.0, w, neg_f)
    # Quantise to the integer grid {0..256}: keeps zero weights at exactly zero,
    # values are bf16-exact and all partial sums (<= 256*B = 2048) are exact in f32,
    # so the CDF below is bit-identical in kernel and reference and its intervals
    # tile [0, total) with no floating-point gaps/overlaps.
    rq = jnp.ceil(r * 256.0)
    total = jnp.sum(rq, axis=1, keepdims=True)               # (B, 1) exact integer

    # --- how many triplets per anchor & which positives are kept ---------------------
    pos_cnt = jnp.sum(pos_f, axis=1, keepdims=True)
    neg_cnt = jnp.sum(neg_f, axis=1, keepdims=True)
    n_trip = jnp.minimum(pos_cnt, neg_cnt)                   # (B, 1)
    tri_b = (row < col).astype(bf16)                         # [j', j]: j' < j
    # exclusive prefix-count of positives (bf16 0/1 inputs -> exact on the MXU)
    rank = jnp.dot(pos_f.astype(bf16), tri_b, preferred_element_type=f32)
    valid = pos_f * (rank < n_trip).astype(f32)              # kept positive slots (B, B)

    # --- vectorised inverse-CDF categorical draw --------------------------------------
    # exclusive / inclusive cumulative weights per anchor (exact integers, one matmul)
    cum_excl = jnp.dot(rq.astype(bf16), tri_b, preferred_element_type=f32)
    cum_incl = cum_excl + rq

    # Flatten the (anchor, positive-slot) pairs to rows r = p*B + a so the candidate
    # axis j stays on lanes and everything is 2D elementwise + lane reductions.
    dist_t = _vtile(dist, B)        # (BB, B): row r -> dist[a, :]
    valid_t = _vtile(valid, B)
    ce_t = _vtile(cum_excl, B)
    ci_t = _vtile(cum_incl, B)
    tot_t = _vtile(total, B)        # (BB, 1)

    # Clamp uniforms so us < total strictly even after rounding (total <= 2048).
    u_c = jnp.minimum(u_flat, 1.0 - 2.0 ** -11)
    us = u_c * tot_t                                          # (BB, 1)
    sel = jnp.logical_and(us >= ce_t, us < ci_t)              # exactly one col w/ rq>0
    neg_d = jnp.sum(jnp.where(sel, dist_t, 0.0), axis=1, keepdims=True)   # (BB, 1)

    # Extract the positive distance / validity of slot p = r // B with a one-hot mask
    # built from iotas (no division needed: j == r//B  <=>  r in [j*B, j*B + B)).
    rr = lax.broadcasted_iota(jnp.int32, (BB, B), 0)
    cc = lax.broadcasted_iota(jnp.int32, (BB, B), 1)
    onehot = jnp.logical_and(rr >= cc * B, rr < cc * B + B).astype(f32)
    pos_d = jnp.sum(dist_t * onehot, axis=1, keepdims=True)       # dist[a, p]
    valid_slot = jnp.sum(valid_t * onehot, axis=1, keepdims=True)  # valid[a, p]

    # --- hinge + mean over all kept triplets ------------------------------------------
    contrib = valid_slot * jnp.maximum(pos_d - neg_d + margin, 0.0)
    n_total = jnp.maximum(jnp.sum(valid), 1.0)   # guard: no triplets -> 0, not NaN
    return jnp.sum(contrib) / n_total


def _make_kernel(margin, cutoff, nonzero_loss_cutoff):
    def kernel(emb_ref, lab_ref, u_ref, out_ref):
        out_ref[0, 0] = _loss_math(
            emb_ref[...], lab_ref[...], u_ref[...],
            margin=margin, cutoff=cutoff, nonzero_loss_cutoff=nonzero_loss_cutoff)
    return kernel


def _prep_inputs(x, y, key):
    """Build the kernel operands (also consumed verbatim by the pure-JAX reference)."""
    B, _ = x.shape
    xb = x.astype(jnp.bfloat16)                              # bf16 operands for the MXU
    labf = y.astype(jnp.float32).reshape(1, B)               # labels as exact f32 ints
    # one uniform per (anchor, positive-slot); row r = p*B + a
    u = jax.random.uniform(key, (B * B, 1), dtype=jnp.float32)
    return xb, labf, u


def distance_weighted_triplet_loss_pallas(x, y, margin,
                                          nonzero_loss_cutoff=1.4, cutoff=0.5,
                                          key=None):
    """x: (B, D) float embeddings; y: (B,) int labels; returns scalar f32 loss."""
    if key is None:
        key = jax.random.PRNGKey(0)
    parts = _prep_inputs(x, y, key)
    out = pl.pallas_call(
        _make_kernel(float(margin), float(cutoff), float(nonzero_loss_cutoff)),
        out_shape=jax.ShapeDtypeStruct((1, 1), jnp.float32),
        in_specs=[pl.BlockSpec(memory_space=pltpu.MemorySpace.VMEM) for _ in range(3)],
        out_specs=pl.BlockSpec(memory_space=pltpu.MemorySpace.SMEM),   # scalar via SMEM
    )(*parts)
    return out[0, 0]


def _reference(parts, margin, cutoff=0.5, nonzero_loss_cutoff=1.4):
    """Pure-JAX reference: identical math on identical operands (incl. the uniforms)."""
    return _loss_math(*parts, margin=margin, cutoff=cutoff,
                      nonzero_loss_cutoff=nonzero_loss_cutoff)


if __name__ == "__main__":
    key = jax.random.PRNGKey(0)
    k_emb, k_neg = jax.random.split(key)
    B, D = 8, 32
    margin = 0.5

    # Scale so pairwise distances straddle cutoff (0.5) and nonzero_loss_cutoff (1.4),
    # exercising both the distance-weighted sampling path and the clamp.
    x = 0.12 * jax.random.normal(k_emb, (B, D), dtype=jnp.float32)
    y = jnp.array([0, 0, 1, 1, 2, 2, 0, 1], dtype=jnp.int32)

    loss = distance_weighted_triplet_loss_pallas(x, y, margin, key=k_neg)
    jax.block_until_ready(loss)

    parts = _prep_inputs(x, y, k_neg)
    ref = _reference(parts, margin)

    assert jnp.isfinite(loss), loss
    assert jnp.allclose(loss, ref, atol=1e-4, rtol=1e-4), (loss, ref)
    print("KERNEL_OK")
</pallas_src>

<mosaic_0001>
module attributes {stable_mosaic.version = 11 : i64} {
  func.func @kernel(%arg0: memref<8x32xbf16, #tpu.memory_space<vmem>>, %arg1: memref<1x8xf32, #tpu.memory_space<vmem>>, %arg2: memref<64x1xf32, #tpu.memory_space<vmem>>, %arg3: memref<1x1xf32, #tpu.memory_space<smem>>) attributes {dimension_semantics = [], scalar_prefetch = 0 : i64, scratch_operands = 0 : i64, tpu.core_type = #tpu.core_type<tc>} {
    %c0 = arith.constant 0 : index
    %c0_0 = arith.constant 0 : index
    %0 = vector.load %arg0[%c0, %c0_0] : memref<8x32xbf16, #tpu.memory_space<vmem>>, vector<8x32xbf16>
    %c0_1 = arith.constant 0 : index
    %c0_2 = arith.constant 0 : index
    %1 = vector.load %arg1[%c0_1, %c0_2] : memref<1x8xf32, #tpu.memory_space<vmem>>, vector<1x8xf32>
    %c0_3 = arith.constant 0 : index
    %c0_4 = arith.constant 0 : index
    %2 = vector.load %arg2[%c0_3, %c0_4] : memref<64x1xf32, #tpu.memory_space<vmem>>, vector<64x1xf32>
    %cst = arith.constant dense<0.000000e+00> : vector<8x8xf32>
    %3 = tpu.matmul %0, %0, %cst {dimension_numbers = #tpu.dot_dimension_numbers<[1], [1], [0], [0], [0, 0, 1, 0], [], []>} : vector<8x32xbf16>, vector<8x32xbf16>, vector<8x8xf32> -> vector<8x8xf32>
    %4 = tpu.iota {dimensions = array<i32: 0>} : vector<8x8xi32>
    %5 = tpu.iota {dimensions = array<i32: 1>} : vector<8x8xi32>
    %6 = arith.cmpi eq, %4, %5 : vector<8x8xi32>
    %7 = arith.extui %6 : vector<8x8xi1> to vector<8x8xi32>
    %8 = arith.sitofp %7 : vector<8x8xi32> to vector<8x8xf32>
    %9 = arith.mulf %3, %8 : vector<8x8xf32>
    %cst_5 = arith.constant dense<0.000000e+00> : vector<8xf32>
    %10 = vector.multi_reduction <add>, %9, %cst_5 [1] : vector<8x8xf32> to vector<8xf32>
    %11 = vector.shape_cast %10 : vector<8xf32> to vector<8x1xf32>
    %12 = arith.mulf %3, %8 : vector<8x8xf32>
    %cst_6 = arith.constant dense<0.000000e+00> : vector<8xf32>
    %13 = vector.multi_reduction <add>, %12, %cst_6 [0] : vector<8x8xf32> to vector<8xf32>
    %14 = vector.shape_cast %13 : vector<8xf32> to vector<1x8xf32>
    %15 = vector.broadcast %11 : vector<8x1xf32> to vector<8x8xf32>
    %16 = vector.broadcast %14 : vector<1x8xf32> to vector<8x8xf32>
    %17 = arith.addf %15, %16 : vector<8x8xf32>
    %cst_7 = arith.constant 2.000000e+00 : f32
    %18 = vector.broadcast %cst_7 : f32 to vector<8x8xf32>
    %19 = arith.mulf %18, %3 : vector<8x8xf32>
    %20 = arith.subf %17, %19 : vector<8x8xf32>
    %cst_8 = arith.constant 0.000000e+00 : f32
    %21 = vector.broadcast %cst_8 : f32 to vector<8x8xf32>
    %22 = arith.maximumf %20, %21 : vector<8x8xf32>
    %23 = math.sqrt %22 : vector<8x8xf32>
    %cst_9 = arith.constant 5.000000e-01 : f32
    %24 = vector.broadcast %cst_9 : f32 to vector<8x8xf32>
    %25 = arith.maximumf %23, %24 : vector<8x8xf32>
    %26 = vector.broadcast %1 : vector<1x8xf32> to vector<8x8xf32>
    %27 = arith.mulf %8, %26 : vector<8x8xf32>
    %cst_10 = arith.constant dense<0.000000e+00> : vector<8xf32>
    %28 = vector.multi_reduction <add>, %27, %cst_10 [1] : vector<8x8xf32> to vector<8xf32>
    %29 = vector.shape_cast %28 : vector<8xf32> to vector<8x1xf32>
    %30 = vector.broadcast %29 : vector<8x1xf32> to vector<8x8xf32>
    %31 = vector.broadcast %1 : vector<1x8xf32> to vector<8x8xf32>
    %32 = arith.cmpf oeq, %30, %31 : vector<8x8xf32>
    %33 = arith.cmpi ne, %4, %5 : vector<8x8xi32>
    %34 = arith.andi %32, %33 : vector<8x8xi1>
    %35 = arith.extui %34 : vector<8x8xi1> to vector<8x8xi32>
    %36 = arith.sitofp %35 : vector<8x8xi32> to vector<8x8xf32>
    %cst_11 = arith.constant dense<true> : vector<8x8xi1>
    %37 = arith.xori %32, %cst_11 : vector<8x8xi1>
    %38 = arith.extui %37 : vector<8x8xi1> to vector<8x8xi32>
    %39 = arith.sitofp %38 : vector<8x8xi32> to vector<8x8xf32>
    %40 = math.log %25 : vector<8x8xf32>
    %cst_12 = arith.constant -3.000000e+01 : f32
    %41 = vector.broadcast %cst_12 : f32 to vector<8x8xf32>
    %42 = arith.mulf %41, %40 : vector<8x8xf32>
    %cst_13 = arith.constant 2.500000e-01 : f32
    %43 = vector.broadcast %cst_13 : f32 to vector<8x8xf32>
    %44 = arith.mulf %43, %25 : vector<8x8xf32>
    %45 = arith.mulf %44, %25 : vector<8x8xf32>
    %cst_14 = arith.constant 1.000000e+00 : f32
    %46 = vector.broadcast %cst_14 : f32 to vector<8x8xf32>
    %47 = arith.subf %46, %45 : vector<8x8xf32>
    %cst_15 = arith.constant 9.99999993E-9 : f32
    %48 = vector.broadcast %cst_15 : f32 to vector<8x8xf32>
    %49 = arith.maximumf %47, %48 : vector<8x8xf32>
    %50 = math.log %49 : vector<8x8xf32>
    %cst_16 = arith.constant 1.450000e+01 : f32
    %51 = vector.broadcast %cst_16 : f32 to vector<8x8xf32>
    %52 = arith.mulf %51, %50 : vector<8x8xf32>
    %53 = arith.subf %42, %52 : vector<8x8xf32>
    %54 = vector.shape_cast %53 : vector<8x8xf32> to vector<1x8x8xf32>
    %cst_17 = arith.constant dense<0x7F800000> : vector<1xf32>
    %55 = vector.multi_reduction <minimumf>, %54, %cst_17 [1, 2] : vector<1x8x8xf32> to vector<1xf32>
    %56 = vector.shape_cast %55 : vector<1xf32> to vector<1x1x1xf32>
    %57 = vector.extract %56[0, 0, 0] : f32 from vector<1x1x1xf32>
    %58 = vector.shape_cast %53 : vector<8x8xf32> to vector<1x8x8xf32>
    %cst_18 = arith.constant dense<0xFF800000> : vector<1xf32>
    %59 = vector.multi_reduction <maximumf>, %58, %cst_18 [1, 2] : vector<1x8x8xf32> to vector<1xf32>
    %60 = vector.shape_cast %59 : vector<1xf32> to vector<1x1x1xf32>
    %61 = vector.extract %60[0, 0, 0] : f32 from vector<1x1x1xf32>
    %62 = arith.subf %61, %57 : f32
    %cst_19 = arith.constant 9.99999993E-9 : f32
    %63 = arith.addf %62, %cst_19 : f32
    %cst_20 = arith.constant 1.000000e+00 : f32
    %64 = arith.divf %cst_20, %63 : f32
    %65 = vector.broadcast %61 : f32 to vector<8x8xf32>
    %66 = arith.subf %53, %65 : vector<8x8xf32>
    %67 = vector.broadcast %64 : f32 to vector<8x8xf32>
    %68 = arith.mulf %66, %67 : vector<8x8xf32>
    %69 = math.exp %68 : vector<8x8xf32>
    %70 = arith.mulf %69, %39 : vector<8x8xf32>
    %cst_21 = arith.constant 1.400000e+00 : f32
    %71 = vector.broadcast %cst_21 : f32 to vector<8x8xf32>
    %72 = arith.cmpf olt, %25, %71 : vector<8x8xf32>
    %73 = arith.extui %72 : vector<8x8xi1> to vector<8x8xi32>
    %74 = arith.sitofp %73 : vector<8x8xi32> to vector<8x8xf32>
    %75 = arith.mulf %70, %74 : vector<8x8xf32>
    %cst_22 = arith.constant dense<0.000000e+00> : vector<8xf32>
    %76 = vector.multi_reduction <add>, %75, %cst_22 [1] : vector<8x8xf32> to vector<8xf32>
    %77 = vector.shape_cast %76 : vector<8xf32> to vector<8x1xf32>
    %cst_23 = arith.constant 0.000000e+00 : f32
    %78 = vector.broadcast %cst_23 : f32 to vector<8x1xf32>
    %79 = arith.cmpf ogt, %77, %78 : vector<8x1xf32>
    %80 = vector.shape_cast %79 : vector<8x1xi1> to vector<8x1xi1>
    %81 = vector.broadcast %80 : vector<8x1xi1> to vector<8x8xi1>
    %82 = arith.select %81, %75, %39 : vector<8x8xi1>, vector<8x8xf32>
    %cst_24 = arith.constant 2.560000e+02 : f32
    %83 = vector.broadcast %cst_24 : f32 to vector<8x8xf32>
    %84 = arith.mulf %82, %83 : vector<8x8xf32>
    %85 = math.ceil %84 : vector<8x8xf32>
    %cst_25 = arith.constant dense<0.000000e+00> : vector<8xf32>
    %86 = vector.multi_reduction <add>, %85, %cst_25 [1] : vector<8x8xf32> to vector<8xf32>
    %87 = vector.shape_cast %86 : vector<8xf32> to vector<8x1xf32>
    %cst_26 = arith.constant dense<0.000000e+00> : vector<8xf32>
    %88 = vector.multi_reduction <add>, %36, %cst_26 [1] : vector<8x8xf32> to vector<8xf32>
    %89 = vector.shape_cast %88 : vector<8xf32> to vector<8x1xf32>
    %cst_27 = arith.constant dense<0.000000e+00> : vector<8xf32>
    %90 = vector.multi_reduction <add>, %39, %cst_27 [1] : vector<8x8xf32> to vector<8xf32>
    %91 = vector.shape_cast %90 : vector<8xf32> to vector<8x1xf32>
    %92 = arith.minimumf %89, %91 : vector<8x1xf32>
    %93 = arith.cmpi slt, %4, %5 : vector<8x8xi32>
    %94 = arith.extui %93 : vector<8x8xi1> to vector<8x8xi32>
    %95 = arith.sitofp %94 : vector<8x8xi32> to vector<8x8xf32>
    %96 = arith.truncf %95 : vector<8x8xf32> to vector<8x8xbf16>
    %97 = arith.truncf %36 : vector<8x8xf32> to vector<8x8xbf16>
    %cst_28 = arith.constant dense<0.000000e+00> : vector<8x8xf32>
    %98 = tpu.matmul %97, %96, %cst_28 {dimension_numbers = #tpu.dot_dimension_numbers<[1], [0], [0], [1], [0, 0, 1, 1], [], []>} : vector<8x8xbf16>, vector<8x8xbf16>, vector<8x8xf32> -> vector<8x8xf32>
    %99 = vector.broadcast %92 : vector<8x1xf32> to vector<8x8xf32>
    %100 = arith.cmpf olt, %98, %99 : vector<8x8xf32>
    %101 = arith.extui %100 : vector<8x8xi1> to vector<8x8xi32>
    %102 = arith.sitofp %101 : vector<8x8xi32> to vector<8x8xf32>
    %103 = arith.mulf %36, %102 : vector<8x8xf32>
    %104 = arith.truncf %85 : vector<8x8xf32> to vector<8x8xbf16>
    %cst_29 = arith.constant dense<0.000000e+00> : vector<8x8xf32>
    %105 = tpu.matmul %104, %96, %cst_29 {dimension_numbers = #tpu.dot_dimension_numbers<[1], [0], [0], [1], [0, 0, 1, 1], [], []>} : vector<8x8xbf16>, vector<8x8xbf16>, vector<8x8xf32> -> vector<8x8xf32>
    %106 = arith.addf %105, %85 : vector<8x8xf32>
    %107 = tpu.concatenate %25, %25, %25, %25, %25, %25, %25, %25 in 0 : vector<8x8xf32>, vector<8x8xf32>, vector<8x8xf32>, vector<8x8xf32>, vector<8x8xf32>, vector<8x8xf32>, vector<8x8xf32>, vector<8x8xf32> -> vector<64x8xf32>
    %108 = tpu.concatenate %103, %103, %103, %103, %103, %103, %103, %103 in 0 : vector<8x8xf32>, vector<8x8xf32>, vector<8x8xf32>, vector<8x8xf32>, vector<8x8xf32>, vector<8x8xf32>, vector<8x8xf32>, vector<8x8xf32> -> vector<64x8xf32>
    %109 = tpu.concatenate %105, %105, %105, %105, %105, %105, %105, %105 in 0 : vector<8x8xf32>, vector<8x8xf32>, vector<8x8xf32>, vector<8x8xf32>, vector<8x8xf32>, vector<8x8xf32>, vector<8x8xf32>, vector<8x8xf32> -> vector<64x8xf32>
    %110 = tpu.concatenate %106, %106, %106, %106, %106, %106, %106, %106 in 0 : vector<8x8xf32>, vector<8x8xf32>, vector<8x8xf32>, vector<8x8xf32>, vector<8x8xf32>, vector<8x8xf32>, vector<8x8xf32>, vector<8x8xf32> -> vector<64x8xf32>
    %111 = tpu.concatenate %87, %87, %87, %87, %87, %87, %87, %87 in 0 : vector<8x1xf32>, vector<8x1xf32>, vector<8x1xf32>, vector<8x1xf32>, vector<8x1xf32>, vector<8x1xf32>, vector<8x1xf32>, vector<8x1xf32> -> vector<64x1xf32>
    %cst_30 = arith.constant 0.999511718 : f32
    %112 = vector.broadcast %cst_30 : f32 to vector<64x1xf32>
    %113 = arith.minimumf %2, %112 : vector<64x1xf32>
    %114 = arith.mulf %113, %111 : vector<64x1xf32>
    %115 = vector.broadcast %114 : vector<64x1xf32> to vector<64x8xf32>
    %116 = arith.cmpf oge, %115, %109 : vector<64x8xf32>
    %117 = vector.broadcast %114 : vector<64x1xf32> to vector<64x8xf32>
    %118 = arith.cmpf olt, %117, %110 : vector<64x8xf32>
    %119 = arith.andi %116, %118 : vector<64x8xi1>
    %cst_31 = arith.constant 0.000000e+00 : f32
    %120 = vector.broadcast %cst_31 : f32 to vector<64x8xf32>
    %121 = arith.select %119, %107, %120 : vector<64x8xi1>, vector<64x8xf32>
    %cst_32 = arith.constant dense<0.000000e+00> : vector<64xf32>
    %122 = vector.multi_reduction <add>, %121, %cst_32 [1] : vector<64x8xf32> to vector<64xf32>
    %123 = vector.shape_cast %122 : vector<64xf32> to vector<64x1xf32>
    %124 = tpu.iota {dimensions = array<i32: 0>} : vector<64x8xi32>
    %125 = tpu.iota {dimensions = array<i32: 1>} : vector<64x8xi32>
    %c8_i32 = arith.constant 8 : i32
    %126 = vector.broadcast %c8_i32 : i32 to vector<64x8xi32>
    %127 = arith.muli %125, %126 : vector<64x8xi32>
    %128 = arith.cmpi sge, %124, %127 : vector<64x8xi32>
    %c8_i32_33 = arith.constant 8 : i32
    %129 = vector.broadcast %c8_i32_33 : i32 to vector<64x8xi32>
    %130 = arith.muli %125, %129 : vector<64x8xi32>
    %c8_i32_34 = arith.constant 8 : i32
    %131 = vector.broadcast %c8_i32_34 : i32 to vector<64x8xi32>
    %132 = arith.addi %130, %131 : vector<64x8xi32>
    %133 = arith.cmpi slt, %124, %132 : vector<64x8xi32>
    %134 = arith.andi %128, %133 : vector<64x8xi1>
    %135 = arith.extui %134 : vector<64x8xi1> to vector<64x8xi32>
    %136 = arith.sitofp %135 : vector<64x8xi32> to vector<64x8xf32>
    %137 = arith.mulf %107, %136 : vector<64x8xf32>
    %cst_35 = arith.constant dense<0.000000e+00> : vector<64xf32>
    %138 = vector.multi_reduction <add>, %137, %cst_35 [1] : vector<64x8xf32> to vector<64xf32>
    %139 = vector.shape_cast %138 : vector<64xf32> to vector<64x1xf32>
    %140 = arith.mulf %108, %136 : vector<64x8xf32>
    %cst_36 = arith.constant dense<0.000000e+00> : vector<64xf32>
    %141 = vector.multi_reduction <add>, %140, %cst_36 [1] : vector<64x8xf32> to vector<64xf32>
    %142 = vector.shape_cast %141 : vector<64xf32> to vector<64x1xf32>
    %143 = arith.subf %139, %123 : vector<64x1xf32>
    %cst_37 = arith.constant 5.000000e-01 : f32
    %144 = vector.broadcast %cst_37 : f32 to vector<64x1xf32>
    %145 = arith.addf %143, %144 : vector<64x1xf32>
    %cst_38 = arith.constant 0.000000e+00 : f32
    %146 = vector.broadcast %cst_38 : f32 to vector<64x1xf32>
    %147 = arith.maximumf %145, %146 : vector<64x1xf32>
    %148 = arith.mulf %142, %147 : vector<64x1xf32>
    %149 = vector.shape_cast %103 : vector<8x8xf32> to vector<1x8x8xf32>
    %cst_39 = arith.constant dense<0.000000e+00> : vector<1xf32>
    %150 = vector.multi_reduction <add>, %149, %cst_39 [1, 2] : vector<1x8x8xf32> to vector<1xf32>
    %151 = vector.shape_cast %150 : vector<1xf32> to vector<1x1x1xf32>
    %152 = vector.extract %151[0, 0, 0] : f32 from vector<1x1x1xf32>
    %cst_40 = arith.constant 1.000000e+00 : f32
    %153 = arith.maximumf %152, %cst_40 : f32
    %154 = vector.shape_cast %148 : vector<64x1xf32> to vector<1x64x1xf32>
    %cst_41 = arith.constant dense<0.000000e+00> : vector<1xf32>
    %155 = vector.multi_reduction <add>, %154, %cst_41 [1, 2] : vector<1x64x1xf32> to vector<1xf32>
    %156 = vector.shape_cast %155 : vector<1xf32> to vector<1x1x1xf32>
    %157 = vector.extract %156[0, 0, 0] : f32 from vector<1x1x1xf32>
    %158 = arith.divf %157, %153 : f32
    %c0_42 = arith.constant 0 : index
    %c0_43 = arith.constant 0 : index
    %159 = memref.load %arg3[%c0_42, %c0_43] : memref<1x1xf32, #tpu.memory_space<smem>>
    memref.store %158, %arg3[%c0_42, %c0_43] : memref<1x1xf32, #tpu.memory_space<smem>>
    return
  }
}

</mosaic_0001>

<llo_original>
// kernel: tpu_custom_call.1
$region0: #{tpu_custom_call.1}
  #allocation0 [shape = 'u32[]', space=smem, size = 0x4, offset = 0x4, fixed_abs, tag = 'smem constant byte address 0x4 - core index']
  #allocation1 [shape = 'u32[144,128]{1,0:T(1,128)}', space=vmem, size = 0x12000, scoped, tag = 'internal scratch']
  %s0 = inlined_call_operand.vmem [shape: bf16[8,32], index: 0, kind: input, shape index: {}]
  %s1 = inlined_call_operand.vmem [shape: f32[1,8], index: 1, kind: input, shape index: {}]
  %s2 = inlined_call_operand.vmem [shape: f32[64,1], index: 2, kind: input, shape index: {}]
  %s3 = inlined_call_operand.hbm [shape: f32[1,1], index: 3, kind: output, shape index: {}]
  %s4 = sld [smem:[#allocation0]]
  $region22: #{tpu_custom_call.1} parent=0
    _
  %s6 = ssub.s32 1, %s4
  %s7 = scalar_select 0, %s6, %s4
  $region1: #{tpu_custom_call.1} parent=0
    #allocation2 [shape = 'u8[512]{0}', space=smem, size = 0x200, scoped, tag = 'output window, operand 0, single buffered']
    #allocation3 [shape = 's32[1]{0}', space=sflag, size = 0x4, scoped, tag = 'scoped memory for tpu_custom_call.1']
    %8 = vsyncpa [#allocation3], 0
    // Predicated region
    $region2: #{tpu_custom_call.1} parent=1 // pred_check
      _
    $region3: #{tpu_custom_call.1} parent=1 // pred_check_branch
      %10 = sbr.rel (0) target = $region5
    $region4: #{tpu_custom_call.1} parent=1 // pred_region
      _
    $region5: #{tpu_custom_call.1} parent=1 // pred_fallthru
      _
    // Predicated region
    $region6: #{tpu_custom_call.1} parent=1 // pred_check
      _
    $region7: #{tpu_custom_call.1} parent=1 // pred_check_branch
      %12 = sbr.rel (0) target = $region9
    $region8: #{tpu_custom_call.1} parent=1 // pred_region
      _
    $region9: #{tpu_custom_call.1} parent=1 // pred_fallthru
      _
    // Predicated region
    $region10: #{tpu_custom_call.1} parent=1 // pred_check
      _
    $region11: #{tpu_custom_call.1} parent=1 // pred_check_branch
      %14 = sbr.rel (0) target = $region13
    $region12: #{tpu_custom_call.1} parent=1 // pred_region
      _
    $region13: #{tpu_custom_call.1} parent=1 // pred_fallthru
      _
    %v16 = vld [vmem:[%s0] sm:$0xf]
    %v17 = vld [vmem:[%s1] sm:$0x1]
    %v18 = vld [vmem:[%s2] sm:$0xff]
    %v19 = vld [vmem:[%s2 + $0x8] sm:$0xff]
    %v20 = vld [vmem:[%s2 + $0x10] sm:$0xff]
    %v21 = vld [vmem:[%s2 + $0x18] sm:$0xff]
    %v22 = vld [vmem:[%s2 + $0x20] sm:$0xff]
    %v23 = vld [vmem:[%s2 + $0x28] sm:$0xff]
    %v24 = vld [vmem:[%s2 + $0x30] sm:$0xff]
    %v25 = vld [vmem:[%s2 + $0x38] sm:$0xff]
    %vm26 = vcmask 261120
    %v28 = vsel %vm26, %v16, 0
    %30 = vmatprep.subr.bf16.mxu0 0
    %31 = vmatpush1.bf16.xpose.msra.mxu0 0
    %32 = vmatprep.subr.bf16.mxu0 0
    %33 = vmatpush1.bf16.xpose.msra.mxu0 0
    %34 = vmatprep.subr.bf16.mxu0 0
    %35 = vmatpush1.bf16.xpose.msra.mxu0 0
    %36 = vmatprep.subr.bf16.mxu0 0
    %37 = vmatpush1.bf16.xpose.msra.mxu0 0
    %38 = vmatprep.subr.bf16.mxu0 0
    %39 = vmatpush1.bf16.xpose.msra.mxu0 0
    %40 = vmatprep.subr.bf16.mxu0 0
    %41 = vmatpush1.bf16.xpose.msra.mxu0 0
    %42 = vmatprep.subr.bf16.mxu0 0
    %43 = vmatpush1.bf16.xpose.msra.mxu0 0
    %44 = vmatprep.subr.bf16.mxu0 0
    %45 = vmatpush1.bf16.xpose.msra.mxu0 %v28
    %46 = vmatprep.subr.bf16.mxu0 0
    %47 = vmatpush2.bf16.xpose.msra.mxu0 0
    %48 = vmatprep.subr.bf16.mxu0 0
    %49 = vmatpush2.bf16.xpose.msra.mxu0 0
    %50 = vmatprep.subr.bf16.mxu0 0
    %51 = vmatpush2.bf16.xpose.msra.mxu0 0
    %52 = vmatprep.subr.bf16.mxu0 0
    %53 = vmatpush2.bf16.xpose.msra.mxu0 0
    %54 = vmatprep.subr.bf16.mxu0 0
    %55 = vmatpush2.bf16.xpose.msra.mxu0 0
    %56 = vmatprep.subr.bf16.mxu0 0
    %57 = vmatpush2.bf16.xpose.msra.mxu0 0
    %58 = vmatprep.subr.bf16.mxu0 0
    %59 = vmatpush2.bf16.xpose.msra.mxu0 0
    %60 = vmatprep.subr.bf16.mxu0 0
    %61 = vmatpush2.bf16.xpose.msra.mxu0 0
    %62 = vmatprep.mubr.bf16.mxu0 0
    %63 = vmatmul.mubr.bf16.gmra.mxu0 %v28
    %v64 = vpop.f32.mrf.mxu0
    %v65 = vadd.f32 0.0, %v64
    %v66 = vpop.f32.mrf.mxu0
    %v67 = vpop.f32.mrf.mxu0
    %v68 = vpop.f32.mrf.mxu0
    %69 = vdwg.mxu0
    %v70 = vlaneseq
    %v71 = vshrl.u32 %v70, 7
    %v72 = vlaneseq
    %v73 = vand.u32 %v72, 127
    %vm74 = vcmp.eq.s32.totalorder %v71, %v73
    %v75 = vsel %vm74, 1, 0
    %v76 = vcvt.s32.f32 %v75
    %v77 = vmul.f32 %v65, %v76
    %vm78 = vcmask 64512
    %v79 = vsel %vm78, %v77, 0.0
    %80 = vadd.xlane.f32.xlu0 %v79
    %v81 = vpop.xlane.xlu0 %80
    %v82 = vrot.slane %v79, 4
    %v83 = vadd.f32 %v79, %v82
    %v84 = vrot.slane %v83, 2
    %v85 = vadd.f32 %v83, %v84
    %v86 = vrot.slane %v85, 1
    %v87 = vadd.f32 %v85, %v86
    %v88 = vadd.f32 %v81, %v87
    %v89 = vmul.f32 %v65, 2.0
    %v90 = vsub.f32 %v88, %v89
    %v91 = vmax.f32 %v90, 0.0
    %v92 = vrsqrt.pop %v91
    %v93 = vmul.f32 %v91, %v92
    %vm94 = vcmp.eq.f32.partialorder %v91, inf
    %v95 = vsel %vm94, %v91, %v93
    %vm96 = vcmp.eq.f32.partialorder %v91, 0.0
    %v97 = vand.u32 %v91, 2147483648
    %v98 = vsel %vm96, %v97, %v95
    %v99 = vmax.f32 %v98, 0.5
    %v101 = vlaneseq
    %v102 = vshrl.u32 %v101, 7
    %v103 = vsub.s32 0, %v102
    %v104 = vrot.slane %v17, %v103
    %v106 = vmul.f32 %v76, %v104
    %v107 = vsel %vm78, %v106, 0.0
    %108 = vadd.xlane.f32.xlu0 %v107
    %v109 = vpop.xlane.xlu0 %108
    %vm110 = vcmp.eq.f32.partialorder %v109, %v104
    %vm111 = vcmp.ne.s32.totalorder %v71, %v73
    %vm112 = vmand %vm110, %vm111
    %v113 = vsel %vm112, 1, 0
    %v114 = vcvt.s32.f32 %v113
    %vm115 = vmxor %vm110, 1
    %v116 = vsel %vm115, 1, 0
    %v117 = vcvt.s32.f32 %v116
    %v118 = vlog2.pop %v99
    %v119 = vmul.f32 %v118, 0.6931472
    %v120 = vmul.f32 %v119, -30.0
    %v121 = vmul.f32 %v99, 0.25
    %v122 = vmul.f32 %v121, %v99
    %v123 = vsub.f32 1.0, %v122
    %v124 = vmax.f32 %v123, 1e-08
    %v125 = vlog2.pop %v124
    %v126 = vmul.f32 %v125, 0.6931472
    %v127 = vmul.f32 %v126, 14.5
    %v128 = vsub.f32 %v120, %v127
    %v129 = vsel %vm78, %v128, inf
    %130 = vmin.xlane.f32.xlu0 %v129
    %v131 = vpop.xlane.xlu0 %130
    %v132 = vrot.slane %v131, 4
    %v133 = vmin.f32 %v131, %v132
    %v134 = vrot.slane %v133, 2
    %v135 = vmin.f32 %v133, %v134
    %v136 = vrot.slane %v135, 1
    %v137 = vmin.f32 %v135, %v136
    %s138 = vtos %v137
    %v139 = vsel %vm78, %v128, -inf
    %140 = vmax.xlane.f32.xlu0 %v139
    %v141 = vpop.xlane.xlu0 %140
    %v142 = vrot.slane %v141, 4
    %v143 = vmax.f32 %v141, %v142
    %v144 = vrot.slane %v143, 2
    %v145 = vmax.f32 %v143, %v144
    %v146 = vrot.slane %v145, 1
    %v147 = vmax.f32 %v145, %v146
    %s148 = vtos %v147
    %s149 = ssub.f32 %s148, %s138
    %s150 = sadd.f32 %s149, 1e-08
    %v151 = vstv %s150
    %v152 = vrcp.pop %v151
    %s153 = vtos %v152
    %v154 = vstv %s148
    %v155 = vsub.f32 %v128, %v154
    %v156 = vstv %s153
    %v157 = vmul.f32 %v155, %v156
    %v158 = vmul.f32 %v157, 1.442695
    %v159 = vpow.pop %v158
    %v160 = vmul.f32 %v159, %v117
    %vm161 = vcmp.lt.f32.partialorder %v99, 1.4
    %v162 = vsel %vm161, 1, 0
    %v163 = vcvt.s32.f32 %v162
    %v164 = vmul.f32 %v160, %v163
    %v165 = vsel %vm78, %v164, 0.0
    %166 = vadd.xlane.f32.xlu0 %v165
    %v167 = vpop.xlane.xlu0 %166
    %vm168 = vcmp.gt.f32.partialorder %v167, 0.0
    %v169 = vsel %vm168, 1, 0
    %vm170 = vcmp.eq.s32.totalorder %v169, 1
    %v171 = vsel %vm170, %v164, %v117
    %v172 = vmul.f32 %v171, 256.0
    %v173 = vceil.f32 %v172
    %v174 = vsel %vm78, %v173, 0.0
    %175 = vadd.xlane.f32.xlu0 %v174
    %v176 = vpop.xlane.xlu0 %175
    %v177 = vsel %vm78, %v114, 0.0
    %178 = vadd.xlane.f32.xlu0 %v177
    %v179 = vpop.xlane.xlu0 %178
    %v180 = vsel %vm78, %v117, 0.0
    %181 = vadd.xlane.f32.xlu0 %v180
    %v182 = vpop.xlane.xlu0 %181
    %v183 = vmin.f32 %v179, %v182
    %vm184 = vcmp.lt.s32.totalorder %v71, %v73
    %v185 = vsel %vm184, 1, 0
    %v186 = vcvt.s32.f32 %v185
    %v187 = vpack.c.bf16 %v186, %v186
    %v188 = vpack.c.bf16 %v114, %v114
    %v190 = vsel %vm78, %v188, 0
    %vm192 = vcmask 1043456
    %v194 = vsel %vm192, %v187, 0
    %196 = vmatprep.subr.bf16.mxu0 0
    %197 = vmatpush1.bf16.msra.mxu0 0
    %198 = vmatprep.subr.bf16.mxu0 0
    %199 = vmatpush1.bf16.msra.mxu0 0
    %200 = vmatprep.subr.bf16.mxu0 0
    %201 = vmatpush1.bf16.msra.mxu0 0
    %202 = vmatprep.subr.bf16.mxu0 0
    %203 = vmatpush1.bf16.msra.mxu0 0
    %204 = vmatprep.subr.bf16.mxu0 0
    %205 = vmatpush1.bf16.msra.mxu0 0
    %206 = vmatprep.subr.bf16.mxu0 0
    %207 = vmatpush1.bf16.msra.mxu0 0
    %208 = vmatprep.subr.bf16.mxu0 0
    %209 = vmatpush1.bf16.msra.mxu0 0
    %210 = vmatprep.subr.bf16.mxu0 0
    %211 = vmatpush1.bf16.msra.mxu0 %v194
    %212 = vmatprep.subr.bf16.mxu0 0
    %213 = vmatpush2.bf16.msra.mxu0 0
    %214 = vmatprep.subr.bf16.mxu0 0
    %215 = vmatpush2.bf16.msra.mxu0 0
    %216 = vmatprep.subr.bf16.mxu0 0
    %217 = vmatpush2.bf16.msra.mxu0 0
    %218 = vmatprep.subr.bf16.mxu0 0
    %219 = vmatpush2.bf16.msra.mxu0 0
    %220 = vmatprep.subr.bf16.mxu0 0
    %221 = vmatpush2.bf16.msra.mxu0 0
    %222 = vmatprep.subr.bf16.mxu0 0
    %223 = vmatpush2.bf16.msra.mxu0 0
    %224 = vmatprep.subr.bf16.mxu0 0
    %225 = vmatpush2.bf16.msra.mxu0 0
    %226 = vmatprep.subr.bf16.mxu0 0
    %227 = vmatpush2.bf16.msra.mxu0 0
    %228 = vmatprep.mubr.bf16.mxu0 0
    %229 = vmatmul.mubr.bf16.gmra.mxu0 %v190
    %v230 = vpop.f32.mrf.mxu0
    %v231 = vadd.f32 0.0, %v230
    %v232 = vpop.f32.mrf.mxu0
    %v233 = vpop.f32.mrf.mxu0
    %v234 = vpop.f32.mrf.mxu0
    %235 = vdwg.mxu0
    %vm236 = vcmp.lt.f32.partialorder %v231, %v183
    %v237 = vsel %vm236, 1, 0
    %v238 = vcvt.s32.f32 %v237
    %v239 = vmul.f32 %v114, %v238
    %v240 = vpack.c.bf16 %v173, %v173
    %v242 = vsel %vm78, %v240, 0
    %244 = vmatprep.subr.bf16.mxu0 0
    %245 = vmatpush1.bf16.msra.mxu0 0
    %246 = vmatprep.subr.bf16.mxu0 0
    %247 = vmatpush1.bf16.msra.mxu0 0
    %248 = vmatprep.subr.bf16.mxu0 0
    %249 = vmatpush1.bf16.msra.mxu0 0
    %250 = vmatprep.subr.bf16.mxu0 0
    %251 = vmatpush1.bf16.msra.mxu0 0
    %252 = vmatprep.subr.bf16.mxu0 0
    %253 = vmatpush1.bf16.msra.mxu0 0
    %254 = vmatprep.subr.bf16.mxu0 0
    %255 = vmatpush1.bf16.msra.mxu0 0
    %256 = vmatprep.subr.bf16.mxu0 0
    %257 = vmatpush1.bf16.msra.mxu0 0
    %258 = vmatprep.subr.bf16.mxu0 0
    %259 = vmatpush1.bf16.msra.mxu0 %v194
    %260 = vmatprep.subr.bf16.mxu0 0
    %261 = vmatpush2.bf16.msra.mxu0 0
    %262 = vmatprep.subr.bf16.mxu0 0
    %263 = vmatpush2.bf16.msra.mxu0 0
    %264 = vmatprep.subr.bf16.mxu0 0
    %265 = vmatpush2.bf16.msra.mxu0 0
    %266 = vmatprep.subr.bf16.mxu0 0
    %267 = vmatpush2.bf16.msra.mxu0 0
    %268 = vmatprep.subr.bf16.mxu0 0
    %269 = vmatpush2.bf16.msra.mxu0 0
    %270 = vmatprep.subr.bf16.mxu0 0
    %271 = vmatpush2.bf16.msra.mxu0 0
    %272 = vmatprep.subr.bf16.mxu0 0
    %273 = vmatpush2.bf16.msra.mxu0 0
    %274 = vmatprep.subr.bf16.mxu0 0
    %275 = vmatpush2.bf16.msra.mxu0 0
    %276 = vmatprep.mubr.bf16.mxu0 0
    %277 = vmatmul.mubr.bf16.gmra.mxu0 %v242
    %v278 = vpop.f32.mrf.mxu0
    %v279 = vadd.f32 0.0, %v278
    %v280 = vpop.f32.mrf.mxu0
    %v281 = vpop.f32.mrf.mxu0
    %v282 = vpop.f32.mrf.mxu0
    %283 = vdwg.mxu0
    %v284 = vadd.f32 %v279, %v173
    %v285 = vmin.f32 %v18, 0.9995117
    %v286 = vmin.f32 %v19, 0.9995117
    %v287 = vmin.f32 %v20, 0.9995117
    %v288 = vmin.f32 %v21, 0.9995117
    %v289 = vmin.f32 %v22, 0.9995117
    %v290 = vmin.f32 %v23, 0.9995117
    %v291 = vmin.f32 %v24, 0.9995117
    %v292 = vmin.f32 %v25, 0.9995117
    %v293 = vmul.f32 %v285, %v176
    %v294 = vmul.f32 %v286, %v176
    %v295 = vmul.f32 %v287, %v176
    %v296 = vmul.f32 %v288, %v176
    %v297 = vmul.f32 %v289, %v176
    %v298 = vmul.f32 %v290, %v176
    %v299 = vmul.f32 %v291, %v176
    %v300 = vmul.f32 %v292, %v176
    %302 = vset.pattern.permute.xlu0 0
    %303 = vperm.xlu0 %302, %v293
    %v304 = vpop.permute.xlu0 %303
    %307 = vset.pattern.permute.xlu0 0
    %308 = vperm.xlu0 %307, %v294
    %v309 = vpop.permute.xlu0 %308
    %312 = vset.pattern.permute.xlu0 0
    %313 = vperm.xlu0 %312, %v295
    %v314 = vpop.permute.xlu0 %313
    %317 = vset.pattern.permute.xlu0 0
    %318 = vperm.xlu0 %317, %v296
    %v319 = vpop.permute.xlu0 %318
    %322 = vset.pattern.permute.xlu0 0
    %323 = vperm.xlu0 %322, %v297
    %v324 = vpop.permute.xlu0 %323
    %327 = vset.pattern.permute.xlu0 0
    %328 = vperm.xlu0 %327, %v298
    %v329 = vpop.permute.xlu0 %328
    %332 = vset.pattern.permute.xlu0 0
    %333 = vperm.xlu0 %332, %v299
    %v334 = vpop.permute.xlu0 %333
    %337 = vset.pattern.permute.xlu0 0
    %338 = vperm.xlu0 %337, %v300
    %v339 = vpop.permute.xlu0 %338
    %vm341 = vcmp.ge.f32.partialorder %v304, %v279
    %vm342 = vcmp.ge.f32.partialorder %v309, %v279
    %vm343 = vcmp.ge.f32.partialorder %v314, %v279
    %vm344 = vcmp.ge.f32.partialorder %v319, %v279
    %vm345 = vcmp.ge.f32.partialorder %v324, %v279
    %vm346 = vcmp.ge.f32.partialorder %v329, %v279
    %vm347 = vcmp.ge.f32.partialorder %v334, %v279
    %vm348 = vcmp.ge.f32.partialorder %v339, %v279
    %vm349 = vcmp.lt.f32.partialorder %v304, %v284
    %vm350 = vcmp.lt.f32.partialorder %v309, %v284
    %vm351 = vcmp.lt.f32.partialorder %v314, %v284
    %vm352 = vcmp.lt.f32.partialorder %v319, %v284
    %vm353 = vcmp.lt.f32.partialorder %v324, %v284
    %vm354 = vcmp.lt.f32.partialorder %v329, %v284
    %vm355 = vcmp.lt.f32.partialorder %v334, %v284
    %vm356 = vcmp.lt.f32.partialorder %v339, %v284
    %vm357 = vmand %vm341, %vm349
    %vm358 = vmand %vm342, %vm350
    %vm359 = vmand %vm343, %vm351
    %vm360 = vmand %vm344, %vm352
    %vm361 = vmand %vm345, %vm353
    %vm362 = vmand %vm346, %vm354
    %vm363 = vmand %vm347, %vm355
    %vm364 = vmand %vm348, %vm356
    %v365 = vsel %vm357, %v99, 0.0
    %v366 = vsel %vm358, %v99, 0.0
    %v367 = vsel %vm359, %v99, 0.0
    %v368 = vsel %vm360, %v99, 0.0
    %v369 = vsel %vm361, %v99, 0.0
    %v370 = vsel %vm362, %v99, 0.0
    %v371 = vsel %vm363, %v99, 0.0
    %v372 = vsel %vm364, %v99, 0.0
    %v373 = vsel %vm78, %v365, 0.0
    %374 = vadd.xlane.f32.xlu0 %v373
    %v375 = vpop.xlane.xlu0 %374
    %v376 = vsel %vm78, %v366, 0.0
    %377 = vadd.xlane.f32.xlu0 %v376
    %v378 = vpop.xlane.xlu0 %377
    %v379 = vsel %vm78, %v367, 0.0
    %380 = vadd.xlane.f32.xlu0 %v379
    %v381 = vpop.xlane.xlu0 %380
    %v382 = vsel %vm78, %v368, 0.0
    %383 = vadd.xlane.f32.xlu0 %v382
    %v384 = vpop.xlane.xlu0 %383
    %v385 = vsel %vm78, %v369, 0.0
    %386 = vadd.xlane.f32.xlu0 %v385
    %v387 = vpop.xlane.xlu0 %386
    %v388 = vsel %vm78, %v370, 0.0
    %389 = vadd.xlane.f32.xlu0 %v388
    %v390 = vpop.xlane.xlu0 %389
    %v391 = vsel %vm78, %v371, 0.0
    %392 = vadd.xlane.f32.xlu0 %v391
    %v393 = vpop.xlane.xlu0 %392
    %v394 = vsel %vm78, %v372, 0.0
    %395 = vadd.xlane.f32.xlu0 %v394
    %v396 = vpop.xlane.xlu0 %395
    %v397 = vadd.s32 %v71, 8
    %v398 = vadd.s32 %v71, 16
    %v399 = vadd.s32 %v71, 24
    %v400 = vadd.s32 %v71, 32
    %v401 = vadd.s32 %v71, 40
    %v402 = vadd.s32 %v71, 48
    %v403 = vadd.s32 %v71, 56
    %v404 = vmul.u32 %v73, 8
    %vm405 = vcmp.ge.s32.totalorder %v71, %v404
    %vm406 = vcmp.ge.s32.totalorder %v397, %v404
    %vm407 = vcmp.ge.s32.totalorder %v398, %v404
    %vm408 = vcmp.ge.s32.totalorder %v399, %v404
    %vm409 = vcmp.ge.s32.totalorder %v400, %v404
    %vm410 = vcmp.ge.s32.totalorder %v401, %v404
    %vm411 = vcmp.ge.s32.totalorder %v402, %v404
    %vm412 = vcmp.ge.s32.totalorder %v403, %v404
    %v413 = vadd.s32 %v404, 8
    %vm414 = vcmp.lt.s32.totalorder %v71, %v413
    %vm415 = vcmp.lt.s32.totalorder %v397, %v413
    %vm416 = vcmp.lt.s32.totalorder %v398, %v413
    %vm417 = vcmp.lt.s32.totalorder %v399, %v413
    %vm418 = vcmp.lt.s32.totalorder %v400, %v413
    %vm419 = vcmp.lt.s32.totalorder %v401, %v413
    %vm420 = vcmp.lt.s32.totalorder %v402, %v413
    %vm421 = vcmp.lt.s32.totalorder %v403, %v413
    %vm422 = vmand %vm405, %vm414
    %vm423 = vmand %vm406, %vm415
    %vm424 = vmand %vm407, %vm416
    %vm425 = vmand %vm408, %vm417
    %vm426 = vmand %vm409, %vm418
    %vm427 = vmand %vm410, %vm419
    %vm428 = vmand %vm411, %vm420
    %vm429 = vmand %vm412, %vm421
    %v430 = vsel %vm422, 1, 0
    %v431 = vsel %vm423, 1, 0
    %v432 = vsel %vm424, 1, 0
    %v433 = vsel %vm425, 1, 0
    %v434 = vsel %vm426, 1, 0
    %v435 = vsel %vm427, 1, 0
    %v436 = vsel %vm428, 1, 0
    %v437 = vsel %vm429, 1, 0
    %v438 = vcvt.s32.f32 %v430
    %v439 = vcvt.s32.f32 %v431
    %v440 = vcvt.s32.f32 %v432
    %v441 = vcvt.s32.f32 %v433
    %v442 = vcvt.s32.f32 %v434
    %v443 = vcvt.s32.f32 %v435
    %v444 = vcvt.s32.f32 %v436
    %v445 = vcvt.s32.f32 %v437
    %v446 = vmul.f32 %v99, %v438
    %v447 = vmul.f32 %v99, %v439
    %v448 = vmul.f32 %v99, %v440
    %v449 = vmul.f32 %v99, %v441
    %v450 = vmul.f32 %v99, %v442
    %v451 = vmul.f32 %v99, %v443
    %v452 = vmul.f32 %v99, %v444
    %v453 = vmul.f32 %v99, %v445
    %v454 = vsel %vm78, %v446, 0.0
    %455 = vadd.xlane.f32.xlu0 %v454
    %v456 = vpop.xlane.xlu0 %455
    %v457 = vsel %vm78, %v447, 0.0
    %458 = vadd.xlane.f32.xlu0 %v457
    %v459 = vpop.xlane.xlu0 %458
    %v460 = vsel %vm78, %v448, 0.0
    %461 = vadd.xlane.f32.xlu0 %v460
    %v462 = vpop.xlane.xlu0 %461
    %v463 = vsel %vm78, %v449, 0.0
    %464 = vadd.xlane.f32.xlu0 %v463
    %v465 = vpop.xlane.xlu0 %464
    %v466 = vsel %vm78, %v450, 0.0
    %467 = vadd.xlane.f32.xlu0 %v466
    %v468 = vpop.xlane.xlu0 %467
    %v469 = vsel %vm78, %v451, 0.0
    %470 = vadd.xlane.f32.xlu0 %v469
    %v471 = vpop.xlane.xlu0 %470
    %v472 = vsel %vm78, %v452, 0.0
    %473 = vadd.xlane.f32.xlu0 %v472
    %v474 = vpop.xlane.xlu0 %473
    %v475 = vsel %vm78, %v453, 0.0
    %476 = vadd.xlane.f32.xlu0 %v475
    %v477 = vpop.xlane.xlu0 %476
    %v478 = vmul.f32 %v239, %v438
    %v479 = vmul.f32 %v239, %v439
    %v480 = vmul.f32 %v239, %v440
    %v481 = vmul.f32 %v239, %v441
    %v482 = vmul.f32 %v239, %v442
    %v483 = vmul.f32 %v239, %v443
    %v484 = vmul.f32 %v239, %v444
    %v485 = vmul.f32 %v239, %v445
    %v486 = vsel %vm78, %v478, 0.0
    %487 = vadd.xlane.f32.xlu0 %v486
    %v488 = vpop.xlane.xlu0 %487
    %v489 = vsel %vm78, %v479, 0.0
    %490 = vadd.xlane.f32.xlu0 %v489
    %v491 = vpop.xlane.xlu0 %490
    %v492 = vsel %vm78, %v480, 0.0
    %493 = vadd.xlane.f32.xlu0 %v492
    %v494 = vpop.xlane.xlu0 %493
    %v495 = vsel %vm78, %v481, 0.0
    %496 = vadd.xlane.f32.xlu0 %v495
    %v497 = vpop.xlane.xlu0 %496
    %v498 = vsel %vm78, %v482, 0.0
    %499 = vadd.xlane.f32.xlu0 %v498
    %v500 = vpop.xlane.xlu0 %499
    %v501 = vsel %vm78, %v483, 0.0
    %502 = vadd.xlane.f32.xlu0 %v501
    %v503 = vpop.xlane.xlu0 %502
    %v504 = vsel %vm78, %v484, 0.0
    %505 = vadd.xlane.f32.xlu0 %v504
    %v506 = vpop.xlane.xlu0 %505
    %v507 = vsel %vm78, %v485, 0.0
    %508 = vadd.xlane.f32.xlu0 %v507
    %v509 = vpop.xlane.xlu0 %508
    %v510 = vsub.f32 %v456, %v375
    %v511 = vsub.f32 %v459, %v378
    %v512 = vsub.f32 %v462, %v381
    %v513 = vsub.f32 %v465, %v384
    %v514 = vsub.f32 %v468, %v387
    %v515 = vsub.f32 %v471, %v390
    %v516 = vsub.f32 %v474, %v393
    %v517 = vsub.f32 %v477, %v396
    %v518 = vadd.f32 %v510, 0.5
    %v519 = vadd.f32 %v511, 0.5
    %v520 = vadd.f32 %v512, 0.5
    %v521 = vadd.f32 %v513, 0.5
    %v522 = vadd.f32 %v514, 0.5
    %v523 = vadd.f32 %v515, 0.5
    %v524 = vadd.f32 %v516, 0.5
    %v525 = vadd.f32 %v517, 0.5
    %v526 = vmax.f32 %v518, 0.0
    %v527 = vmax.f32 %v519, 0.0
    %v528 = vmax.f32 %v520, 0.0
    %v529 = vmax.f32 %v521, 0.0
    %v530 = vmax.f32 %v522, 0.0
    %v531 = vmax.f32 %v523, 0.0
    %v532 = vmax.f32 %v524, 0.0
    %v533 = vmax.f32 %v525, 0.0
    %v534 = vmul.f32 %v488, %v526
    %v535 = vmul.f32 %v491, %v527
    %v536 = vmul.f32 %v494, %v528
    %v537 = vmul.f32 %v497, %v529
    %v538 = vmul.f32 %v500, %v530
    %v539 = vmul.f32 %v503, %v531
    %v540 = vmul.f32 %v506, %v532
    %v541 = vmul.f32 %v509, %v533
    %v542 = vsel %vm78, %v239, 0.0
    %543 = vadd.xlane.f32.xlu0 %v542
    %v544 = vpop.xlane.xlu0 %543
    %v545 = vrot.slane %v544, 4
    %v546 = vadd.f32 %v544, %v545
    %v547 = vrot.slane %v546, 2
    %v548 = vadd.f32 %v546, %v547
    %v549 = vrot.slane %v548, 1
    %v550 = vadd.f32 %v548, %v549
    %s551 = vtos %v550
    %s552 = smax.f32 %s551, 1.0
    %vm553 = vcmask 7168
    %v554 = vsel %vm553, %v534, 0.0
    %v555 = vsel %vm553, %v535, 0.0
    %v556 = vadd.f32 %v554, %v555
    %v557 = vsel %vm553, %v536, 0.0
    %v558 = vadd.f32 %v556, %v557
    %v559 = vsel %vm553, %v537, 0.0
    %v560 = vadd.f32 %v558, %v559
    %v561 = vsel %vm553, %v538, 0.0
    %v562 = vadd.f32 %v560, %v561
    %v563 = vsel %vm553, %v539, 0.0
    %v564 = vadd.f32 %v562, %v563
    %v565 = vsel %vm553, %v540, 0.0
    %v566 = vadd.f32 %v564, %v565
    %v567 = vsel %vm553, %v541, 0.0
    %v568 = vadd.f32 %v566, %v567
    %569 = vadd.xlane.f32.xlu0 %v568
    %v570 = vpop.xlane.xlu0 %569
    %v571 = vrot.slane %v570, 4
    %v572 = vadd.f32 %v570, %v571
    %v573 = vrot.slane %v572, 2
    %v574 = vadd.f32 %v572, %v573
    %v575 = vrot.slane %v574, 1
    %v576 = vadd.f32 %v574, %v575
    %s577 = vtos %v576
    %v578 = vstv %s552
    %v579 = vrcp.pop %v578
    %s580 = vtos %v579
    %s581 = smul.f32 %s577, %s580
    %s582 = scalar_lea.smem [#allocation2], 0
    %583 = sst [smem:[%s582]] %s581
    // Predicated region
    $region14: #{tpu_custom_call.1} parent=1 // pred_check
      _
    $region15: #{tpu_custom_call.1} parent=1 // pred_check_branch
      %585 = sbr.rel (0) target = $region17
    $region16: #{tpu_custom_call.1} parent=1 // pred_region
      %s587 = ssub.s32 16, 16
      %588 = vsyncadd [#allocation3], %s587
      %591 = dma.smem_to_hbm [#allocation2], 16, %s3, [#allocation3]
    $region17: #{tpu_custom_call.1} parent=1 // pred_fallthru
      _
    // Predicated region
    $region18: #{tpu_custom_call.1} parent=1 // pred_check
      _
    $region19: #{tpu_custom_call.1} parent=1 // pred_check_branch
      %593 = sbr.rel (0) target = $region21
    $region20: #{tpu_custom_call.1} parent=1 // pred_region
      %594 = dma.done [#allocation3], 16
    $region21: #{tpu_custom_call.1} parent=1 // pred_fallthru
      _
    %595 = sfence
    %596 = vsyncpa [#allocation3], 1

</llo_original>
